<compile_context>
chip_gen: v5e
topology: v5e:2x2
jax: 0.10.0
libtpu: 0.0.40
codegen_flags: <defaults>
</compile_context>

<pallas_src>
import functools

import jax
import jax.numpy as jnp
from jax.experimental import pallas as pl
from jax.experimental.pallas import tpu as pltpu


def gcgru_kernel(z_ref, h_ref, a_ref, w_ref, b_ref, wch_ref, out_ref):
    """One grid step: a block of Bt batch elements flattened to M = Bt*N rows.

    z_ref   (M, D+U)  bf16  per-node [x | h]
    h_ref   (M, U)    f32   previous hidden state
    a_ref   (M, M)    bf16  block-diagonal adjacency for this batch block
    w_ref   (D+U, C)  bf16  fused gate weights; cols [0:U]=r, [U:2U]=u,
                            [2U:3U]=x-part of c (h rows zero), rest zero pad
    b_ref   (1, C)    f32   fused biases (same padding)
    wch_ref (U, U)    bf16  h-part of the candidate gate weight
    out_ref (M, U)    f32   new hidden state
    """
    U = wch_ref.shape[0]
    A = a_ref[...]

    # Graph aggregation A @ [x|h] as ONE block-diagonal matmul.
    az = jnp.dot(A, z_ref[...], preferred_element_type=jnp.float32)   # (M, D+U)

    # Fused r / u / c_x gate projection; C is a multiple of 128 -> lane-dense.
    G = jnp.dot(az.astype(jnp.bfloat16), w_ref[...],
                preferred_element_type=jnp.float32) + b_ref[...]      # (M, C)

    S = jax.nn.sigmoid(G)                      # full-width (unmasked) pass
    r = S[:, :U]
    u = S[:, U:2 * U]

    h = h_ref[...]
    rh = (r * h).astype(jnp.bfloat16)
    arh = jnp.dot(A, rh, preferred_element_type=jnp.float32)          # A @ (r*h)
    c = jnp.tanh(G[:, 2 * U:3 * U]
                 + jnp.dot(arh.astype(jnp.bfloat16), wch_ref[...],
                           preferred_element_type=jnp.float32))

    out_ref[...] = (u * h + (1.0 - u) * c).astype(out_ref.dtype)


def prepare_gcgru_params(params):
    """Fuse/cast the 9 raw gate parameters once (hoist out of the time loop).

    params = (wrx, wrh, br, wux, wuh, bu, wcx, wch, bc), where each w*x is
    (D, U), w*h is (U, U) and biases are (1, U) (nn.Linear weight transposed
    and split into x / h row blocks).
    """
    (wrx, wrh, br, wux, wuh, bu, wcx, wch, bc) = params
    U = wrh.shape[0]

    w_r = jnp.concatenate([wrx, wrh], axis=0)                         # (D+U, U)
    w_u = jnp.concatenate([wux, wuh], axis=0)                         # (D+U, U)
    w_cx = jnp.concatenate([wcx, jnp.zeros((U, U), wcx.dtype)], axis=0)
    w_big = jnp.concatenate([w_r, w_u, w_cx], axis=1)                 # (D+U, 3U)
    b_all = jnp.concatenate([br, bu, bc], axis=1)                     # (1, 3U)

    # Pad the fused output columns to a multiple of 128 lanes (lane-dense G).
    ncol = ((3 * U + 127) // 128) * 128
    if ncol > 3 * U:
        w_big = jnp.pad(w_big, ((0, 0), (0, ncol - 3 * U)))
        b_all = jnp.pad(b_all, ((0, 0), (0, ncol - 3 * U)))

    return (w_big.astype(jnp.bfloat16),
            b_all.astype(jnp.float32),
            wch.astype(jnp.bfloat16))


def _has_two_tensorcores():
    """True on v7x-like chips (2 TCs/chip) where >=2 parallel steps help."""
    try:
        kind = jax.devices()[0].device_kind.lower()
    except Exception:
        return False
    return "7" in kind


def _pick_block_b(B, N, *, target_rows=256, prefer_two_steps=False):
    """Largest divisor of B with block_b*N <= target_rows (fills MXU rows)."""
    divisors = [d for d in range(1, B + 1) if B % d == 0]
    feasible = [d for d in divisors if d * N <= target_rows] or [1]
    bt = max(feasible)
    if prefer_two_steps and B // bt < 2:
        smaller = [d for d in feasible if B // d >= 2]
        if smaller:
            bt = max(smaller)
    return bt


@functools.partial(jax.jit, static_argnames=("block_b",))
def gcgru_cell(x, h, A, fused_params, *, block_b=None):
    """x: (B,N,D), h: (B,N,U), A: (B,N,N) -> new h: (B,N,U)."""
    B, N, D = x.shape
    U = h.shape[-1]
    w_big, b_all, wch_b = fused_params
    ncol = w_big.shape[1]

    if block_b is None:
        block_b = _pick_block_b(B, N, prefer_two_steps=_has_two_tensorcores())
    if B % block_b != 0:
        raise ValueError(f"block_b={block_b} must divide B={B}")
    nb = B // block_b
    if nb > 1 and (block_b * N) % 8 != 0:
        # Sub-block rows must be sublane-aligned; fall back to one full block.
        block_b, nb = B, 1
    M = block_b * N

    # Flattened, layout-preserving (leading-dim) views built in the wrapper.
    z2 = jnp.concatenate([x, h], axis=-1).astype(jnp.bfloat16).reshape(B * N, D + U)
    h2 = h.astype(jnp.float32).reshape(B * N, U)

    # Block-diagonal adjacency: one (M, M) matmul per grid step replaces
    # block_b tiny (N, N) batched matmuls.
    A_b = A.astype(jnp.bfloat16)
    if block_b == 1:
        A_bd = A_b.reshape(B * N, N)
    else:
        eye = jnp.eye(block_b, dtype=A_b.dtype)
        A_bd = jnp.einsum('gbij,bc->gbicj',
                          A_b.reshape(nb, block_b, N, N), eye)
        A_bd = A_bd.reshape(nb * M, M)

    # Only raise the scoped-VMEM limit if the double-buffered block footprint
    # would exceed the conservative defaults (16 MiB v5e / 32 MiB v6e-v7x).
    blk_bytes = (M * M * 2 + M * (D + U) * 2 + 2 * M * U * 4
                 + (D + U) * ncol * 2 + ncol * 4 + U * U * 2)
    cp_kwargs = dict(dimension_semantics=("parallel",))
    if 2 * blk_bytes > 12 * 1024 * 1024:
        cp_kwargs["vmem_limit_bytes"] = int(min(4 * blk_bytes, 56 * 1024 * 1024))

    row_spec = lambda last: pl.BlockSpec((M, last), lambda g: (g, 0))
    full_spec = lambda shape: pl.BlockSpec(shape, lambda g: (0, 0))

    out = pl.pallas_call(
        gcgru_kernel,
        out_shape=jax.ShapeDtypeStruct((B * N, U), jnp.float32),
        grid_spec=pltpu.PrefetchScalarGridSpec(
            num_scalar_prefetch=0,
            grid=(nb,),
            in_specs=[
                row_spec(D + U),            # z = [x|h]          (bf16)
                row_spec(U),                # h                  (f32)
                pl.BlockSpec((M, M), lambda g: (g, 0)),   # block-diag A (bf16)
                full_spec((D + U, ncol)),   # fused gate weights (bf16)
                full_spec((1, ncol)),       # fused biases       (f32)
                full_spec((U, U)),          # Wc_h               (bf16)
            ],
            out_specs=row_spec(U),
        ),
        input_output_aliases={1: 0},        # reuse h's buffer for the new h
        compiler_params=pltpu.CompilerParams(**cp_kwargs),
    )(z2, h2, A_bd, w_big, b_all, wch_b)

    return out.reshape(B, N, U)


def reference_gcgru(x, h, A, params):
    """Pure-JAX f32 reference mirroring the PyTorch forward."""
    (wrx, wrh, br, wux, wuh, bu, wcx, wch, bc) = params
    xh = jnp.concatenate([x, h], axis=-1)
    axh = jnp.einsum('bij,bjf->bif', A, xh)
    wr = jnp.concatenate([wrx, wrh], axis=0)
    wu = jnp.concatenate([wux, wuh], axis=0)
    wc = jnp.concatenate([wcx, wch], axis=0)
    r = jax.nn.sigmoid(axh @ wr + br)
    u = jax.nn.sigmoid(axh @ wu + bu)
    xrh = jnp.concatenate([x, r * h], axis=-1)
    axrh = jnp.einsum('bij,bjf->bif', A, xrh)
    c = jnp.tanh(axrh @ wc + bc)
    return u * h + (1.0 - u) * c


if __name__ == "__main__":
    B, N, D, U = 2, 16, 8, 32   # batch, num_nodes, input_dim, rnn_units

    key = jax.random.PRNGKey(0)
    ks = jax.random.split(key, 12)

    x = jax.random.normal(ks[0], (B, N, D), dtype=jnp.float32)
    h = jax.random.normal(ks[1], (B, N, U), dtype=jnp.float32)
    # Row-normalized random adjacency.
    A_raw = jax.random.uniform(ks[2], (B, N, N), dtype=jnp.float32)
    A = A_raw / jnp.sum(A_raw, axis=-1, keepdims=True)

    # nn.Linear(in=D+U, out=U) weight is (U, D+U); we store its transpose,
    # split into an x-part (D, U) and an h-part (U, U).
    scale = 0.1
    wrx = scale * jax.random.normal(ks[3], (D, U), dtype=jnp.float32)
    wrh = scale * jax.random.normal(ks[4], (U, U), dtype=jnp.float32)
    br = scale * jax.random.normal(ks[5], (1, U), dtype=jnp.float32)
    wux = scale * jax.random.normal(ks[6], (D, U), dtype=jnp.float32)
    wuh = scale * jax.random.normal(ks[7], (U, U), dtype=jnp.float32)
    bu = scale * jax.random.normal(ks[8], (1, U), dtype=jnp.float32)
    wcx = scale * jax.random.normal(ks[9], (D, U), dtype=jnp.float32)
    wch = scale * jax.random.normal(ks[10], (U, U), dtype=jnp.float32)
    bc = scale * jax.random.normal(ks[11], (1, U), dtype=jnp.float32)
    params = (wrx, wrh, br, wux, wuh, bu, wcx, wch, bc)

    # Weight fusion is hoisted: done once, reused across timesteps.
    fused = prepare_gcgru_params(params)

    out = gcgru_cell(x, h, A, fused)
    out = jax.block_until_ready(out)

    ref = reference_gcgru(x, h, A, params)
    assert out.shape == (B, N, U)
    # bf16 MXU inputs with f32 accumulation -> tolerance loosened vs pure f32.
    assert jnp.allclose(out, ref, atol=1e-2, rtol=1e-2), (
        "mismatch vs reference, max abs err = "
        f"{float(jnp.max(jnp.abs(out - ref)))}")

    print("KERNEL_OK")
</pallas_src>

<mosaic_0001>
module attributes {stable_mosaic.version = 11 : i64} {
  func.func @gcgru_kernel(%arg0: i32, %arg1: memref<32x40xbf16, #tpu.memory_space<vmem>>, %arg2: memref<32x32xf32, #tpu.memory_space<vmem>>, %arg3: memref<32x32xbf16, #tpu.memory_space<vmem>>, %arg4: memref<40x128xbf16, #tpu.memory_space<vmem>>, %arg5: memref<1x128xf32, #tpu.memory_space<vmem>>, %arg6: memref<32x32xbf16, #tpu.memory_space<vmem>>, %arg7: memref<32x32xf32, #tpu.memory_space<vmem>>) attributes {dimension_semantics = [#tpu.dimension_semantics<parallel>], iteration_bounds = array<i64: 1>, scalar_prefetch = 0 : i64, scratch_operands = 0 : i64, tpu.core_type = #tpu.core_type<tc>, window_params = [{transform_indices = @transform_0, window_bounds = array<i64: 32, 40>}, {transform_indices = @transform_1, window_bounds = array<i64: 32, 32>}, {transform_indices = @transform_2, window_bounds = array<i64: 32, 32>}, {pipeline_mode = #tpu.pipeline_mode<synchronous>, transform_indices = @transform_3, window_bounds = array<i64: 40, 128>}, {pipeline_mode = #tpu.pipeline_mode<synchronous>, transform_indices = @transform_4, window_bounds = array<i64: 1, 128>}, {pipeline_mode = #tpu.pipeline_mode<synchronous>, transform_indices = @transform_5, window_bounds = array<i64: 32, 32>}, {transform_indices = @transform_6, window_bounds = array<i64: 32, 32>}]} {
    %c0 = arith.constant 0 : index
    %c0_0 = arith.constant 0 : index
    %0 = vector.load %arg3[%c0, %c0_0] : memref<32x32xbf16, #tpu.memory_space<vmem>>, vector<32x32xbf16>
    %c0_1 = arith.constant 0 : index
    %c0_2 = arith.constant 0 : index
    %1 = vector.load %arg1[%c0_1, %c0_2] : memref<32x40xbf16, #tpu.memory_space<vmem>>, vector<32x40xbf16>
    %cst = arith.constant dense<0.000000e+00> : vector<32x40xf32>
    %2 = tpu.matmul %0, %1, %cst {dimension_numbers = #tpu.dot_dimension_numbers<[1], [0], [0], [1], [0, 0, 1, 1], [], []>} : vector<32x32xbf16>, vector<32x40xbf16>, vector<32x40xf32> -> vector<32x40xf32>
    %3 = arith.truncf %2 : vector<32x40xf32> to vector<32x40xbf16>
    %c0_3 = arith.constant 0 : index
    %c0_4 = arith.constant 0 : index
    %4 = vector.load %arg4[%c0_3, %c0_4] : memref<40x128xbf16, #tpu.memory_space<vmem>>, vector<40x128xbf16>
    %cst_5 = arith.constant dense<0.000000e+00> : vector<32x128xf32>
    %5 = tpu.matmul %3, %4, %cst_5 {dimension_numbers = #tpu.dot_dimension_numbers<[1], [0], [0], [1], [0, 0, 1, 1], [], []>} : vector<32x40xbf16>, vector<40x128xbf16>, vector<32x128xf32> -> vector<32x128xf32>
    %c0_6 = arith.constant 0 : index
    %c0_7 = arith.constant 0 : index
    %6 = vector.load %arg5[%c0_6, %c0_7] : memref<1x128xf32, #tpu.memory_space<vmem>>, vector<1x128xf32>
    %7 = vector.broadcast %6 : vector<1x128xf32> to vector<32x128xf32>
    %8 = arith.addf %5, %7 : vector<32x128xf32>
    %9 = arith.negf %8 : vector<32x128xf32>
    %10 = math.exp %9 : vector<32x128xf32>
    %cst_8 = arith.constant 1.000000e+00 : f32
    %11 = vector.broadcast %cst_8 : f32 to vector<32x128xf32>
    %12 = arith.addf %11, %10 : vector<32x128xf32>
    %13 = arith.divf %11, %12 : vector<32x128xf32>
    %14 = vector.extract_strided_slice %13 {offsets = [0, 0], sizes = [32, 32], strides = [1, 1]} : vector<32x128xf32> to vector<32x32xf32>
    %15 = vector.extract_strided_slice %13 {offsets = [0, 32], sizes = [32, 32], strides = [1, 1]} : vector<32x128xf32> to vector<32x32xf32>
    %c0_9 = arith.constant 0 : index
    %c0_10 = arith.constant 0 : index
    %16 = vector.load %arg2[%c0_9, %c0_10] : memref<32x32xf32, #tpu.memory_space<vmem>>, vector<32x32xf32>
    %17 = arith.mulf %14, %16 : vector<32x32xf32>
    %18 = arith.truncf %17 : vector<32x32xf32> to vector<32x32xbf16>
    %cst_11 = arith.constant dense<0.000000e+00> : vector<32x32xf32>
    %19 = tpu.matmul %0, %18, %cst_11 {dimension_numbers = #tpu.dot_dimension_numbers<[1], [0], [0], [1], [0, 0, 1, 1], [], []>} : vector<32x32xbf16>, vector<32x32xbf16>, vector<32x32xf32> -> vector<32x32xf32>
    %20 = vector.extract_strided_slice %8 {offsets = [0, 64], sizes = [32, 32], strides = [1, 1]} : vector<32x128xf32> to vector<32x32xf32>
    %21 = arith.truncf %19 : vector<32x32xf32> to vector<32x32xbf16>
    %c0_12 = arith.constant 0 : index
    %c0_13 = arith.constant 0 : index
    %22 = vector.load %arg6[%c0_12, %c0_13] : memref<32x32xbf16, #tpu.memory_space<vmem>>, vector<32x32xbf16>
    %cst_14 = arith.constant dense<0.000000e+00> : vector<32x32xf32>
    %23 = tpu.matmul %21, %22, %cst_14 {dimension_numbers = #tpu.dot_dimension_numbers<[1], [0], [0], [1], [0, 0, 1, 1], [], []>} : vector<32x32xbf16>, vector<32x32xbf16>, vector<32x32xf32> -> vector<32x32xf32>
    %24 = arith.addf %20, %23 : vector<32x32xf32>
    %25 = math.tanh %24 : vector<32x32xf32>
    %26 = arith.mulf %15, %16 : vector<32x32xf32>
    %cst_15 = arith.constant 1.000000e+00 : f32
    %27 = vector.broadcast %cst_15 : f32 to vector<32x32xf32>
    %28 = arith.subf %27, %15 : vector<32x32xf32>
    %29 = arith.mulf %28, %25 : vector<32x32xf32>
    %30 = arith.addf %26, %29 : vector<32x32xf32>
    %c0_16 = arith.constant 0 : index
    %c0_17 = arith.constant 0 : index
    %31 = vector.load %arg7[%c0_16, %c0_17] : memref<32x32xf32, #tpu.memory_space<vmem>>, vector<32x32xf32>
    tpu.vector_store %arg7[%c0_16, %c0_17], %30 {strides = array<i32>} : memref<32x32xf32, #tpu.memory_space<vmem>>, vector<32x32xf32>,
    return
  }
  func.func @transform_0(%arg0: i32) -> (i32, i32) {
    %c0_i32 = arith.constant 0 : i32
    %c0_i32_0 = arith.constant 0 : i32
    return %arg0, %c0_i32 : i32, i32
  }
  func.func @transform_1(%arg0: i32) -> (i32, i32) {
    %c0_i32 = arith.constant 0 : i32
    %c0_i32_0 = arith.constant 0 : i32
    return %arg0, %c0_i32 : i32, i32
  }
  func.func @transform_2(%arg0: i32) -> (i32, i32) {
    %c0_i32 = arith.constant 0 : i32
    %c0_i32_0 = arith.constant 0 : i32
    return %arg0, %c0_i32 : i32, i32
  }
  func.func @transform_3(%arg0: i32) -> (i32, i32) {
    %c0_i32 = arith.constant 0 : i32
    %c0_i32_0 = arith.constant 0 : i32
    %c0_i32_1 = arith.constant 0 : i32
    return %c0_i32, %c0_i32_0 : i32, i32
  }
  func.func @transform_4(%arg0: i32) -> (i32, i32) {
    %c0_i32 = arith.constant 0 : i32
    %c0_i32_0 = arith.constant 0 : i32
    %c0_i32_1 = arith.constant 0 : i32
    return %c0_i32, %c0_i32_0 : i32, i32
  }
  func.func @transform_5(%arg0: i32) -> (i32, i32) {
    %c0_i32 = arith.constant 0 : i32
    %c0_i32_0 = arith.constant 0 : i32
    %c0_i32_1 = arith.constant 0 : i32
    return %c0_i32, %c0_i32_0 : i32, i32
  }
  func.func @transform_6(%arg0: i32) -> (i32, i32) {
    %c0_i32 = arith.constant 0 : i32
    %c0_i32_0 = arith.constant 0 : i32
    return %arg0, %c0_i32 : i32, i32
  }
}

</mosaic_0001>

<llo_original>
// kernel: gcgru_cell.1
$region0: #{gcgru_cell.1}
  #allocation0 [shape = 'u32[]', space=smem, size = 0x4, offset = 0x4, fixed_abs, tag = 'smem constant byte address 0x4 - core index']
  #allocation1 [shape = 'u32[72,128]{1,0:T(1,128)}', space=vmem, size = 0x9000, scoped, tag = 'internal scratch']
  %s0 = inlined_call_operand.vmem [shape: bf16[32,40], index: 0, kind: input, shape index: {}]
  %s1 = inlined_call_operand.vmem [shape: f32[32,32], index: 1, kind: input, shape index: {}, may-alias: {1,6}]
  %s2 = inlined_call_operand.vmem [shape: bf16[32,32], index: 2, kind: input, shape index: {}]
  %s3 = inlined_call_operand.vmem [shape: bf16[40,128], index: 3, kind: input, shape index: {}]
  %s4 = inlined_call_operand.vmem [shape: f32[1,128], index: 4, kind: input, shape index: {}]
  %s5 = inlined_call_operand.vmem [shape: bf16[32,32], index: 5, kind: input, shape index: {}]
  %s6 = inlined_call_operand.vmem [shape: f32[32,32], index: 6, kind: output, shape index: {}, may-alias: {1,6}]
  %s7 = sld [smem:[#allocation0]]
  $region34: #{gcgru_cell.1} parent=0
    _
  %s9 = ssub.s32 1, %s7
  %s10 = scalar_select 0, %s9, %s7
  // Predicated region
  $region2: #{gcgru_cell.1} parent=0 // pred_check
    _
  $region3: #{gcgru_cell.1} parent=0 // pred_check_branch
    %12 = sbr.rel (0) target = $region5
  $region4: #{gcgru_cell.1} parent=0 // pred_region
    _
  $region5: #{gcgru_cell.1} parent=0 // pred_fallthru
    _
  // Predicated region
  $region6: #{gcgru_cell.1} parent=0 // pred_check
    _
  $region7: #{gcgru_cell.1} parent=0 // pred_check_branch
    %14 = sbr.rel (0) target = $region9
  $region8: #{gcgru_cell.1} parent=0 // pred_region
    _
  $region9: #{gcgru_cell.1} parent=0 // pred_fallthru
    _
  // Predicated region
  $region10: #{gcgru_cell.1} parent=0 // pred_check
    _
  $region11: #{gcgru_cell.1} parent=0 // pred_check_branch
    %16 = sbr.rel (0) target = $region13
  $region12: #{gcgru_cell.1} parent=0 // pred_region
    _
  $region13: #{gcgru_cell.1} parent=0 // pred_fallthru
    _
  // Predicated region
  $region14: #{gcgru_cell.1} parent=0 // pred_check
    _
  $region15: #{gcgru_cell.1} parent=0 // pred_check_branch
    %18 = sbr.rel (0) target = $region17
  $region16: #{gcgru_cell.1} parent=0 // pred_region
    _
  $region17: #{gcgru_cell.1} parent=0 // pred_fallthru
    _
  // Predicated region
  $region18: #{gcgru_cell.1} parent=0 // pred_check
    _
  $region19: #{gcgru_cell.1} parent=0 // pred_check_branch
    %20 = sbr.rel (0) target = $region21
  $region20: #{gcgru_cell.1} parent=0 // pred_region
    _
  $region21: #{gcgru_cell.1} parent=0 // pred_fallthru
    _
  // Predicated region
  $region22: #{gcgru_cell.1} parent=0 // pred_check
    _
  $region23: #{gcgru_cell.1} parent=0 // pred_check_branch
    %22 = sbr.rel (0) target = $region25
  $region24: #{gcgru_cell.1} parent=0 // pred_region
    _
  $region25: #{gcgru_cell.1} parent=0 // pred_fallthru
    _
  %v24 = vld [vmem:[%s2] sm:$0xf]
  %v25 = vld [vmem:[%s2 + $0x4] sm:$0xf]
  %v26 = vld [vmem:[%s2 + $0x8] sm:$0xf]
  %v27 = vld [vmem:[%s2 + $0xc] sm:$0xf]
  %v28 = vld [vmem:[%s0] sm:$0xf]
  %v29 = vld [vmem:[%s0 + $0x4] sm:$0xf]
  %v30 = vld [vmem:[%s0 + $0x8] sm:$0xf]
  %v31 = vld [vmem:[%s0 + $0xc] sm:$0xf]
  %v36 = vunpack.c.l.b16 %v24
  %v37 = vunpack.c.l.b16 %v25
  %v38 = vunpack.c.l.b16 %v26
  %v39 = vunpack.c.l.b16 %v27
  %v40 = vpack.c.b16 %v37, %v36
  %v41 = vpack.c.b16 %v39, %v38
  %v46 = vunpack.c.l.b16 %v28
  %v47 = vunpack.c.l.b16 %v29
  %v48 = vunpack.c.l.b16 %v30
  %v49 = vunpack.c.l.b16 %v31
  %v50 = vpack.c.b16 %v47, %v46
  %v51 = vpack.c.b16 %v49, %v48
  %vm54 = vcmask 261120
  %v56 = vsel %vm54, %v40, 0
  %v59 = vsel %vm54, %v41, 0
  %61 = vmatpush.bf16.msra.mxu0 0
  %62 = vmatpush.bf16.msra.mxu0 0
  %63 = vmatpush.bf16.msra.mxu0 0
  %64 = vmatpush.bf16.msra.mxu0 0
  %65 = vmatpush.bf16.msra.mxu0 0
  %66 = vmatpush.bf16.msra.mxu0 0
  %67 = vmatpush.bf16.msra.mxu0 %v51
  %68 = vmatpush.bf16.msra.mxu0 %v50
  %69 = vmatmul.bf16.gmra.mxu0 %v56
  %v70 = vpop.f32.mrf.mxu0
  %v71 = vadd.f32 0.0, %v70
  %v72 = vpop.f32.mrf.mxu0
  %v73 = vadd.f32 0.0, %v72
  %74 = vmatmul.bf16.gmra.mxu0 %v59
  %v75 = vpop.f32.mrf.mxu0
  %v76 = vadd.f32 0.0, %v75
  %v77 = vpop.f32.mrf.mxu0
  %v78 = vadd.f32 0.0, %v77
  %79 = vdwg.mxu0
  %v80 = vpack.c.bf16 %v73, %v71
  %v81 = vpack.c.bf16 %v78, %v76
  %v82 = vld [vmem:[%s3] sm:$0xf]
  %v83 = vld [vmem:[%s3 + $0x4] sm:$0xf]
  %v84 = vld [vmem:[%s3 + $0x8] sm:$0xf]
  %v85 = vld [vmem:[%s3 + $0xc] sm:$0xf]
  %v86 = vld [vmem:[%s3 + $0x10] sm:$0xf]
  %v87 = vld [vmem:[%s4] sm:$0x1]
  %v89 = vperm.slane %v87, 0
  %v96 = vunpack.c.l.b16 %v82
  %v97 = vunpack.c.l.b16 %v83
  %v98 = vunpack.c.l.b16 %v84
  %v99 = vunpack.c.l.b16 %v85
  %v100 = vunpack.c.l.b16 %v86
  %v101 = vpack.c.b16 %v97, %v96
  %v102 = vpack.c.b16 %v99, %v98
  %v103 = vpack.c.b16 %v100, %v100
  %vm106 = vcmask 326656
  %v108 = vsel %vm106, %v80, 0
  %v111 = vsel %vm106, %v81, 0
  %vm113 = vcmask 1043456
  %v115 = vsel %vm113, %v103, 0
  %117 = vmatpush.bf16.msra.mxu0 0
  %118 = vmatpush.bf16.msra.mxu0 0
  %119 = vmatpush.bf16.msra.mxu0 0
  %120 = vmatpush.bf16.msra.mxu0 0
  %121 = vmatpush.bf16.msra.mxu0 0
  %122 = vmatpush.bf16.msra.mxu0 %v115
  %123 = vmatpush.bf16.msra.mxu0 %v102
  %124 = vmatpush.bf16.msra.mxu0 %v101
  %125 = vmatmul.bf16.gmra.mxu0 %v108
  %v126 = vpop.f32.mrf.mxu0
  %v127 = vadd.f32 %v89, %v126
  %v128 = vpop.f32.mrf.mxu0
  %v129 = vadd.f32 %v89, %v128
  %130 = vmatmul.bf16.gmra.mxu0 %v111
  %v131 = vpop.f32.mrf.mxu0
  %v132 = vadd.f32 %v89, %v131
  %v133 = vpop.f32.mrf.mxu0
  %v134 = vadd.f32 %v89, %v133
  %135 = vdwg.mxu0
  %v136 = vxor.u32 %v127, 2147483648
  %v137 = vxor.u32 %v129, 2147483648
  %v138 = vxor.u32 %v132, 2147483648
  %v139 = vxor.u32 %v134, 2147483648
  %v140 = vmul.f32 %v136, 1.442695
  %v141 = vpow.pop %v140
  %v142 = vmul.f32 %v137, 1.442695
  %v143 = vpow.pop %v142
  %v144 = vmul.f32 %v138, 1.442695
  %v145 = vpow.pop %v144
  %v146 = vmul.f32 %v139, 1.442695
  %v147 = vpow.pop %v146
  %v148 = vadd.f32 %v141, 1.0
  %v149 = vadd.f32 %v143, 1.0
  %v150 = vadd.f32 %v145, 1.0
  %v151 = vadd.f32 %v147, 1.0
  %v152 = vrcp.pop %v148
  %v153 = vmul.f32 %v148, %v152
  %v154 = vsub.f32 1.0, %v153
  %v155 = vmul.f32 %v152, %v154
  %v156 = vadd.f32 %v152, %v155
  %vm157 = vweird.f32 %v148
  %vm158 = vweird.f32 %v152
  %vm159 = vmor %vm157, %vm158
  %v160 = vsel %vm159, %v152, %v156
  %v161 = vand.u32 2147483647, %v148
  %vm162 = vcmp.eq.f32.partialorder %v161, 8.507059e+37
  %v163 = vand.u32 %v148, 2147483648
  %v164 = vor.u32 1.1754944e-38, %v163
  %v165 = vsel %vm162, %v164, %v160
  %v166 = vmul.f32 1.0, %v165
  %v167 = vrcp.pop %v149
  %v168 = vmul.f32 %v149, %v167
  %v169 = vsub.f32 1.0, %v168
  %v170 = vmul.f32 %v167, %v169
  %v171 = vadd.f32 %v167, %v170
  %vm172 = vweird.f32 %v149
  %vm173 = vweird.f32 %v167
  %vm174 = vmor %vm172, %vm173
  %v175 = vsel %vm174, %v167, %v171
  %v176 = vand.u32 2147483647, %v149
  %vm177 = vcmp.eq.f32.partialorder %v176, 8.507059e+37
  %v178 = vand.u32 %v149, 2147483648
  %v179 = vor.u32 1.1754944e-38, %v178
  %v180 = vsel %vm177, %v179, %v175
  %v181 = vmul.f32 1.0, %v180
  %v182 = vrcp.pop %v150
  %v183 = vmul.f32 %v150, %v182
  %v184 = vsub.f32 1.0, %v183
  %v185 = vmul.f32 %v182, %v184
  %v186 = vadd.f32 %v182, %v185
  %vm187 = vweird.f32 %v150
  %vm188 = vweird.f32 %v182
  %vm189 = vmor %vm187, %vm188
  %v190 = vsel %vm189, %v182, %v186
  %v191 = vand.u32 2147483647, %v150
  %vm192 = vcmp.eq.f32.partialorder %v191, 8.507059e+37
  %v193 = vand.u32 %v150, 2147483648
  %v194 = vor.u32 1.1754944e-38, %v193
  %v195 = vsel %vm192, %v194, %v190
  %v196 = vmul.f32 1.0, %v195
  %v197 = vrcp.pop %v151
  %v198 = vmul.f32 %v151, %v197
  %v199 = vsub.f32 1.0, %v198
  %v200 = vmul.f32 %v197, %v199
  %v201 = vadd.f32 %v197, %v200
  %vm202 = vweird.f32 %v151
  %vm203 = vweird.f32 %v197
  %vm204 = vmor %vm202, %vm203
  %v205 = vsel %vm204, %v197, %v201
  %v206 = vand.u32 2147483647, %v151
  %vm207 = vcmp.eq.f32.partialorder %v206, 8.507059e+37
  %v208 = vand.u32 %v151, 2147483648
  %v209 = vor.u32 1.1754944e-38, %v208
  %v210 = vsel %vm207, %v209, %v205
  %v211 = vmul.f32 1.0, %v210
  %v212 = vld [vmem:[%s1] sm:$0xff]
  %v213 = vld [vmem:[%s1 + $0x8] sm:$0xff]
  %v214 = vld [vmem:[%s1 + $0x10] sm:$0xff]
  %v215 = vld [vmem:[%s1 + $0x18] sm:$0xff]
  %v216 = vmul.f32 %v166, %v212
  %v217 = vmul.f32 %v181, %v213
  %v218 = vmul.f32 %v196, %v214
  %v219 = vmul.f32 %v211, %v215
  %v220 = vpack.c.bf16 %v217, %v216
  %v221 = vpack.c.bf16 %v219, %v218
  %222 = vmatpush.bf16.msra.mxu0 0
  %223 = vmatpush.bf16.msra.mxu0 0
  %224 = vmatpush.bf16.msra.mxu0 0
  %225 = vmatpush.bf16.msra.mxu0 0
  %226 = vmatpush.bf16.msra.mxu0 0
  %227 = vmatpush.bf16.msra.mxu0 0
  %228 = vmatpush.bf16.msra.mxu0 %v221
  %229 = vmatpush.bf16.msra.mxu0 %v220
  %230 = vmatmul.bf16.gmra.mxu0 %v56
  %v231 = vpop.f32.mrf.mxu0
  %v232 = vadd.f32 0.0, %v231
  %v233 = vpop.f32.mrf.mxu0
  %v234 = vadd.f32 0.0, %v233
  %235 = vmatmul.bf16.gmra.mxu0 %v59
  %v236 = vpop.f32.mrf.mxu0
  %v237 = vadd.f32 0.0, %v236
  %v238 = vpop.f32.mrf.mxu0
  %v239 = vadd.f32 0.0, %v238
  %240 = vdwg.mxu0
  %v241 = vpack.c.bf16 %v234, %v232
  %v242 = vpack.c.bf16 %v239, %v237
  %v243 = vld [vmem:[%s5] sm:$0xf]
  %v244 = vld [vmem:[%s5 + $0x4] sm:$0xf]
  %v245 = vld [vmem:[%s5 + $0x8] sm:$0xf]
  %v246 = vld [vmem:[%s5 + $0xc] sm:$0xf]
  %v251 = vunpack.c.l.b16 %v243
  %v252 = vunpack.c.l.b16 %v244
  %v253 = vunpack.c.l.b16 %v245
  %v254 = vunpack.c.l.b16 %v246
  %v255 = vpack.c.b16 %v252, %v251
  %v256 = vpack.c.b16 %v254, %v253
  %v260 = vsel %vm54, %v241, 0
  %v263 = vsel %vm54, %v242, 0
  %265 = vmatpush.bf16.msra.mxu0 0
  %266 = vmatpush.bf16.msra.mxu0 0
  %267 = vmatpush.bf16.msra.mxu0 0
  %268 = vmatpush.bf16.msra.mxu0 0
  %269 = vmatpush.bf16.msra.mxu0 0
  %270 = vmatpush.bf16.msra.mxu0 0
  %271 = vmatpush.bf16.msra.mxu0 %v256
  %272 = vmatpush.bf16.msra.mxu0 %v255
  %273 = vmatmul.bf16.gmra.mxu0 %v260
  %v274 = vpop.f32.mrf.mxu0
  %v275 = vadd.f32 0.0, %v274
  %v276 = vpop.f32.mrf.mxu0
  %v277 = vadd.f32 0.0, %v276
  %278 = vmatmul.bf16.gmra.mxu0 %v263
  %v279 = vpop.f32.mrf.mxu0
  %v280 = vadd.f32 0.0, %v279
  %v281 = vpop.f32.mrf.mxu0
  %v282 = vadd.f32 0.0, %v281
  %283 = vdwg.mxu0
  %288 = vrot.lane.b32.xlu0 %v275, 64
  %v289 = vpop.permute.xlu0 %288
  %290 = vrot.lane.b32.xlu0 %v277, 64
  %v291 = vpop.permute.xlu0 %290
  %292 = vrot.lane.b32.xlu0 %v280, 64
  %v293 = vpop.permute.xlu0 %292
  %294 = vrot.lane.b32.xlu0 %v282, 64
  %v295 = vpop.permute.xlu0 %294
  %v300 = vadd.f32 %v127, %v289
  %v301 = vadd.f32 %v129, %v291
  %v302 = vadd.f32 %v132, %v293
  %v303 = vadd.f32 %v134, %v295
  %v304 = vtanh.pop %v300
  %v305 = vtanh.pop %v301
  %v306 = vtanh.pop %v302
  %v307 = vtanh.pop %v303
  %312 = vrot.lane.b32.xlu0 %v212, 32
  %v313 = vpop.permute.xlu0 %312
  %314 = vrot.lane.b32.xlu0 %v213, 32
  %v315 = vpop.permute.xlu0 %314
  %316 = vrot.lane.b32.xlu0 %v214, 32
  %v317 = vpop.permute.xlu0 %316
  %318 = vrot.lane.b32.xlu0 %v215, 32
  %v319 = vpop.permute.xlu0 %318
  %v324 = vmul.f32 %v166, %v313
  %v325 = vmul.f32 %v181, %v315
  %v326 = vmul.f32 %v196, %v317
  %v327 = vmul.f32 %v211, %v319
  %v328 = vsub.f32 1.0, %v166
  %v329 = vsub.f32 1.0, %v181
  %v330 = vsub.f32 1.0, %v196
  %v331 = vsub.f32 1.0, %v211
  %336 = vrot.lane.b32.xlu0 %v304, 96
  %v337 = vpop.permute.xlu0 %336
  %338 = vrot.lane.b32.xlu0 %v305, 96
  %v339 = vpop.permute.xlu0 %338
  %340 = vrot.lane.b32.xlu0 %v306, 96
  %v341 = vpop.permute.xlu0 %340
  %342 = vrot.lane.b32.xlu0 %v307, 96
  %v343 = vpop.permute.xlu0 %342
  %v348 = vmul.f32 %v328, %v337
  %v349 = vmul.f32 %v329, %v339
  %v350 = vmul.f32 %v330, %v341
  %v351 = vmul.f32 %v331, %v343
  %v352 = vadd.f32 %v324, %v348
  %v353 = vadd.f32 %v325, %v349
  %v354 = vadd.f32 %v326, %v350
  %v355 = vadd.f32 %v327, %v351
  %360 = vrot.lane.b32.xlu0 %v352, 96
  %v361 = vpop.permute.xlu0 %360
  %362 = vrot.lane.b32.xlu0 %v353, 96
  %v363 = vpop.permute.xlu0 %362
  %364 = vrot.lane.b32.xlu0 %v354, 96
  %v365 = vpop.permute.xlu0 %364
  %366 = vrot.lane.b32.xlu0 %v355, 96
  %v367 = vpop.permute.xlu0 %366
  %372 = vst.msk [vmem:[%s6] sm:$0xff] %vm54, %v361
  %373 = vst.msk [vmem:[%s6 + $0x8] sm:$0xff] %vm54, %v363
  %374 = vst.msk [vmem:[%s6 + $0x10] sm:$0xff] %vm54, %v365
  %375 = vst.msk [vmem:[%s6 + $0x18] sm:$0xff] %vm54, %v367
  // Predicated region
  $region26: #{gcgru_cell.1} parent=0 // pred_check
    _
  $region27: #{gcgru_cell.1} parent=0 // pred_check_branch
    %377 = sbr.rel (0) target = $region29
  $region28: #{gcgru_cell.1} parent=0 // pred_region
    _
  $region29: #{gcgru_cell.1} parent=0 // pred_fallthru
    _
  // Predicated region
  $region30: #{gcgru_cell.1} parent=0 // pred_check
    _
  $region31: #{gcgru_cell.1} parent=0 // pred_check_branch
    %379 = sbr.rel (0) target = $region33
  $region32: #{gcgru_cell.1} parent=0 // pred_region
    _
  $region33: #{gcgru_cell.1} parent=0 // pred_fallthru
    _

</llo_original>
